<compile_context>
chip_gen: v5e
topology: v5e:2x2
jax: 0.10.0
libtpu: 0.0.40
codegen_flags: <defaults>
</compile_context>

<pallas_src>
import jax
import jax.numpy as jnp
from jax.experimental import pallas as pl
from jax.experimental.pallas import tpu as pltpu


def _round_up(x, m):
    return ((x + m - 1) // m) * m


def _choose_tile_b(B, tile_b):
    """8-row-aligned batch tile; prefer >= 2 grid steps (v7x has 2 TCs)."""
    tile_b = _round_up(max(8, tile_b), 8)
    tile_b = min(tile_b, _round_up(B, 8))
    two_step = _round_up(-(-B // 2), 8)  # ceil(B/2), 8-aligned
    if B > 8 and two_step < tile_b:
        tile_b = two_step
    return tile_b


def mlp_kernel(x_ref, w1_ref, b1_ref, w2_ref, b2_ref, w3_ref, b3_ref, o_ref):
    out_size = o_ref.shape[1]
    # Layer 1: (tile_b, d_in) @ (d_in, 128) -> f32, + bias, ReLU
    h1 = jnp.dot(x_ref[...], w1_ref[...], preferred_element_type=jnp.float32)
    h1 = jnp.maximum(h1 + b1_ref[...], 0.0)
    # Layer 2 (hidden 64 zero-padded to 128 lanes for the MXU)
    h2 = jnp.dot(h1.astype(w2_ref.dtype), w2_ref[...],
                 preferred_element_type=jnp.float32)
    h2 = jnp.maximum(h2 + b2_ref[...], 0.0)
    # Layer 3: compute 128-wide on the MXU, store only the true out_size lanes
    h3 = jnp.dot(h2.astype(w3_ref.dtype), w3_ref[...],
                 preferred_element_type=jnp.float32)
    o_ref[...] = (h3[:, :out_size] + b3_ref[...]).astype(o_ref.dtype)


def init_params(key, input_size, output_size):
    """Raw params, PyTorch-like init. Weights (in, out); biases (1, out)."""
    ks = jax.random.split(key, 6)

    def linear(kw, kb, fan_in, fan_out):
        bound = 1.0 / jnp.sqrt(fan_in)
        w = jax.random.uniform(kw, (fan_in, fan_out), jnp.float32, -bound, bound)
        b = jax.random.uniform(kb, (1, fan_out), jnp.float32, -bound, bound)
        return w, b

    w1, b1 = linear(ks[0], ks[1], input_size, 128)
    w2, b2 = linear(ks[2], ks[3], 128, 64)
    w3, b3 = linear(ks[4], ks[5], 64, output_size)
    return (w1, b1, w2, b2, w3, b3)


def prepare_params(params, dtype=jnp.float32):
    """One-time padding/casting (hoisted out of the forward).

    Returns (w1, b1, w2p, b2p, w3p, b3):
      w1  (in, 128)  dtype   b1  (1, 128) f32
      w2p (128, 128) dtype   b2p (1, 128) f32   (cols 64.. zero)
      w3p (128, 128) dtype                       (rows 64.. / cols out.. zero)
      b3  (1, out)   f32     (kept unpadded -> narrow, lane-masked HBM store)
    """
    w1, b1, w2, b2, w3, b3 = params
    h2 = w2.shape[1]
    out_size = w3.shape[1]
    h2p = _round_up(h2, 128)
    outp = _round_up(out_size, 128)
    w2p = jnp.pad(w2, ((0, 0), (0, h2p - h2)))
    b2p = jnp.pad(b2, ((0, 0), (0, h2p - h2)))
    w3p = jnp.pad(w3, ((0, h2p - h2), (0, outp - out_size)))
    return (w1.astype(dtype), b1.astype(jnp.float32),
            w2p.astype(dtype), b2p.astype(jnp.float32),
            w3p.astype(dtype), b3.astype(jnp.float32))


def mlp_forward(x, prepared_params, tile_b=1024):
    """x: (B, in_features). prepared_params from prepare_params()."""
    w1, b1, w2p, b2p, w3p, b3 = prepared_params
    B, d_in = x.shape
    out_size = b3.shape[1]

    x = x.astype(w1.dtype)                      # bf16 path if weights are bf16
    tile_b = _choose_tile_b(B, tile_b)
    grid = (pl.cdiv(B, tile_b),)                # ragged last block handled by Pallas

    # Weights/biases: full-array block, same block every step -> VMEM-resident.
    resident = lambda a: pl.BlockSpec(a.shape, lambda i: (0,) * a.ndim)

    flops = 2 * B * (d_in * w1.shape[1]
                     + w2p.shape[0] * w2p.shape[1]
                     + w3p.shape[0] * w3p.shape[1])
    bytes_accessed = (x.size * x.dtype.itemsize
                      + sum(a.size * a.dtype.itemsize for a in prepared_params)
                      + B * out_size * 4)

    return pl.pallas_call(
        mlp_kernel,
        out_shape=jax.ShapeDtypeStruct((B, out_size), jnp.float32),
        grid_spec=pl.GridSpec(
            grid=grid,
            in_specs=[
                pl.BlockSpec((tile_b, d_in), lambda i: (i, 0)),   # x tile
                resident(w1), resident(b1),
                resident(w2p), resident(b2p),
                resident(w3p), resident(b3),
            ],
            out_specs=pl.BlockSpec((tile_b, out_size), lambda i: (i, 0)),
        ),
        compiler_params=pltpu.CompilerParams(
            dimension_semantics=("parallel",)),
        cost_estimate=pl.CostEstimate(
            flops=flops, transcendentals=0, bytes_accessed=bytes_accessed),
    )(x, w1, b1, w2p, b2p, w3p, b3)


def _reference(x, params):
    w1, b1, w2, b2, w3, b3 = params
    r = jnp.maximum(x @ w1 + b1, 0.0)
    r = jnp.maximum(r @ w2 + b2, 0.0)
    return r @ w3 + b3


if __name__ == "__main__":
    key = jax.random.PRNGKey(0)
    k_x, k_x2, k_p = jax.random.split(key, 3)

    input_size = 32   # number of tabular feature columns (train.iloc[:, :-1])
    output_size = 4   # number of classes
    params = init_params(k_p, input_size, output_size)

    fwd = jax.jit(mlp_forward, static_argnames=("tile_b",))

    # f32 path: tight correctness check.
    params_f32 = prepare_params(params, dtype=jnp.float32)

    x_small = jax.random.normal(k_x, (8, input_size), dtype=jnp.float32)
    out_small = fwd(x_small, params_f32)
    jax.block_until_ready(out_small)
    assert out_small.shape == (8, output_size)
    assert jnp.allclose(out_small, _reference(x_small, params),
                        atol=1e-5, rtol=1e-5)

    # Larger batch: exercises >=2 grid steps and the ragged (masked) last tile.
    x_big = jax.random.normal(k_x2, (300, input_size), dtype=jnp.float32)
    out_big = fwd(x_big, params_f32)
    jax.block_until_ready(out_big)
    assert out_big.shape == (300, output_size)
    assert jnp.allclose(out_big, _reference(x_big, params),
                        atol=1e-5, rtol=1e-5)

    # bf16-streamed weights/activations (f32 accumulation): loose tolerance.
    params_bf16 = prepare_params(params, dtype=jnp.bfloat16)
    out_bf16 = fwd(x_big, params_bf16)
    jax.block_until_ready(out_bf16)
    assert out_bf16.shape == (300, output_size)
    assert bool(jnp.all(jnp.isfinite(out_bf16)))
    assert jnp.allclose(out_bf16, _reference(x_big, params),
                        atol=2e-1, rtol=1e-1)

    print("KERNEL_OK")
</pallas_src>

<mosaic_0001>
module attributes {stable_mosaic.version = 11 : i64} {
  func.func @mlp_kernel(%arg0: i32, %arg1: memref<8x32xf32, #tpu.memory_space<vmem>>, %arg2: memref<32x128xf32, #tpu.memory_space<vmem>>, %arg3: memref<1x128xf32, #tpu.memory_space<vmem>>, %arg4: memref<128x128xf32, #tpu.memory_space<vmem>>, %arg5: memref<1x128xf32, #tpu.memory_space<vmem>>, %arg6: memref<128x128xf32, #tpu.memory_space<vmem>>, %arg7: memref<1x4xf32, #tpu.memory_space<vmem>>, %arg8: memref<8x4xf32, #tpu.memory_space<vmem>>) attributes {dimension_semantics = [#tpu.dimension_semantics<parallel>], iteration_bounds = array<i64: 1>, scalar_prefetch = 0 : i64, scratch_operands = 0 : i64, tpu.core_type = #tpu.core_type<tc>, window_params = [{transform_indices = @transform_0, window_bounds = array<i64: 8, 32>}, {pipeline_mode = #tpu.pipeline_mode<synchronous>, transform_indices = @transform_1, window_bounds = array<i64: 32, 128>}, {pipeline_mode = #tpu.pipeline_mode<synchronous>, transform_indices = @transform_2, window_bounds = array<i64: 1, 128>}, {pipeline_mode = #tpu.pipeline_mode<synchronous>, transform_indices = @transform_3, window_bounds = array<i64: 128, 128>}, {pipeline_mode = #tpu.pipeline_mode<synchronous>, transform_indices = @transform_4, window_bounds = array<i64: 1, 128>}, {pipeline_mode = #tpu.pipeline_mode<synchronous>, transform_indices = @transform_5, window_bounds = array<i64: 128, 128>}, {pipeline_mode = #tpu.pipeline_mode<synchronous>, transform_indices = @transform_6, window_bounds = array<i64: 1, 4>}, {transform_indices = @transform_7, window_bounds = array<i64: 8, 4>}]} {
    %c0 = arith.constant 0 : index
    %c0_0 = arith.constant 0 : index
    %0 = vector.load %arg1[%c0, %c0_0] : memref<8x32xf32, #tpu.memory_space<vmem>>, vector<8x32xf32>
    %c0_1 = arith.constant 0 : index
    %c0_2 = arith.constant 0 : index
    %1 = vector.load %arg2[%c0_1, %c0_2] : memref<32x128xf32, #tpu.memory_space<vmem>>, vector<32x128xf32>
    %cst = arith.constant dense<0.000000e+00> : vector<8x128xf32>
    %2 = tpu.matmul %0, %1, %cst {dimension_numbers = #tpu.dot_dimension_numbers<[1], [0], [0], [1], [0, 0, 1, 1], [], []>} : vector<8x32xf32>, vector<32x128xf32>, vector<8x128xf32> -> vector<8x128xf32>
    %c0_3 = arith.constant 0 : index
    %c0_4 = arith.constant 0 : index
    %3 = vector.load %arg3[%c0_3, %c0_4] : memref<1x128xf32, #tpu.memory_space<vmem>>, vector<1x128xf32>
    %4 = vector.broadcast %3 : vector<1x128xf32> to vector<8x128xf32>
    %5 = arith.addf %2, %4 : vector<8x128xf32>
    %cst_5 = arith.constant 0.000000e+00 : f32
    %6 = vector.broadcast %cst_5 : f32 to vector<8x128xf32>
    %7 = arith.maximumf %5, %6 : vector<8x128xf32>
    %c0_6 = arith.constant 0 : index
    %c0_7 = arith.constant 0 : index
    %8 = vector.load %arg4[%c0_6, %c0_7] : memref<128x128xf32, #tpu.memory_space<vmem>>, vector<128x128xf32>
    %cst_8 = arith.constant dense<0.000000e+00> : vector<8x128xf32>
    %9 = tpu.matmul %7, %8, %cst_8 {dimension_numbers = #tpu.dot_dimension_numbers<[1], [0], [0], [1], [0, 0, 1, 1], [], []>} : vector<8x128xf32>, vector<128x128xf32>, vector<8x128xf32> -> vector<8x128xf32>
    %c0_9 = arith.constant 0 : index
    %c0_10 = arith.constant 0 : index
    %10 = vector.load %arg5[%c0_9, %c0_10] : memref<1x128xf32, #tpu.memory_space<vmem>>, vector<1x128xf32>
    %11 = vector.broadcast %10 : vector<1x128xf32> to vector<8x128xf32>
    %12 = arith.addf %9, %11 : vector<8x128xf32>
    %cst_11 = arith.constant 0.000000e+00 : f32
    %13 = vector.broadcast %cst_11 : f32 to vector<8x128xf32>
    %14 = arith.maximumf %12, %13 : vector<8x128xf32>
    %c0_12 = arith.constant 0 : index
    %c0_13 = arith.constant 0 : index
    %15 = vector.load %arg6[%c0_12, %c0_13] : memref<128x128xf32, #tpu.memory_space<vmem>>, vector<128x128xf32>
    %cst_14 = arith.constant dense<0.000000e+00> : vector<8x128xf32>
    %16 = tpu.matmul %14, %15, %cst_14 {dimension_numbers = #tpu.dot_dimension_numbers<[1], [0], [0], [1], [0, 0, 1, 1], [], []>} : vector<8x128xf32>, vector<128x128xf32>, vector<8x128xf32> -> vector<8x128xf32>
    %17 = vector.extract_strided_slice %16 {offsets = [0, 0], sizes = [8, 4], strides = [1, 1]} : vector<8x128xf32> to vector<8x4xf32>
    %c0_15 = arith.constant 0 : index
    %c0_16 = arith.constant 0 : index
    %18 = vector.load %arg7[%c0_15, %c0_16] : memref<1x4xf32, #tpu.memory_space<vmem>>, vector<1x4xf32>
    %19 = vector.broadcast %18 : vector<1x4xf32> to vector<8x4xf32>
    %20 = arith.addf %17, %19 : vector<8x4xf32>
    %c0_17 = arith.constant 0 : index
    %c0_18 = arith.constant 0 : index
    %21 = vector.load %arg8[%c0_17, %c0_18] : memref<8x4xf32, #tpu.memory_space<vmem>>, vector<8x4xf32>
    tpu.vector_store %arg8[%c0_17, %c0_18], %20 {strides = array<i32>} : memref<8x4xf32, #tpu.memory_space<vmem>>, vector<8x4xf32>,
    return
  }
  func.func @transform_0(%arg0: i32) -> (i32, i32) {
    %c0_i32 = arith.constant 0 : i32
    %c0_i32_0 = arith.constant 0 : i32
    return %arg0, %c0_i32 : i32, i32
  }
  func.func @transform_1(%arg0: i32) -> (i32, i32) {
    %c0_i32 = arith.constant 0 : i32
    %c0_i32_0 = arith.constant 0 : i32
    %c0_i32_1 = arith.constant 0 : i32
    return %c0_i32, %c0_i32_0 : i32, i32
  }
  func.func @transform_2(%arg0: i32) -> (i32, i32) {
    %c0_i32 = arith.constant 0 : i32
    %c0_i32_0 = arith.constant 0 : i32
    %c0_i32_1 = arith.constant 0 : i32
    return %c0_i32, %c0_i32_0 : i32, i32
  }
  func.func @transform_3(%arg0: i32) -> (i32, i32) {
    %c0_i32 = arith.constant 0 : i32
    %c0_i32_0 = arith.constant 0 : i32
    %c0_i32_1 = arith.constant 0 : i32
    return %c0_i32, %c0_i32_0 : i32, i32
  }
  func.func @transform_4(%arg0: i32) -> (i32, i32) {
    %c0_i32 = arith.constant 0 : i32
    %c0_i32_0 = arith.constant 0 : i32
    %c0_i32_1 = arith.constant 0 : i32
    return %c0_i32, %c0_i32_0 : i32, i32
  }
  func.func @transform_5(%arg0: i32) -> (i32, i32) {
    %c0_i32 = arith.constant 0 : i32
    %c0_i32_0 = arith.constant 0 : i32
    %c0_i32_1 = arith.constant 0 : i32
    return %c0_i32, %c0_i32_0 : i32, i32
  }
  func.func @transform_6(%arg0: i32) -> (i32, i32) {
    %c0_i32 = arith.constant 0 : i32
    %c0_i32_0 = arith.constant 0 : i32
    %c0_i32_1 = arith.constant 0 : i32
    return %c0_i32, %c0_i32_0 : i32, i32
  }
  func.func @transform_7(%arg0: i32) -> (i32, i32) {
    %c0_i32 = arith.constant 0 : i32
    %c0_i32_0 = arith.constant 0 : i32
    return %arg0, %c0_i32 : i32, i32
  }
}

</mosaic_0001>

<llo_original>
// kernel: mlp_forward.1
$region0: #{mlp_forward.1}
  #allocation0 [shape = 'u32[]', space=smem, size = 0x4, offset = 0x4, fixed_abs, tag = 'smem constant byte address 0x4 - core index']
  #allocation1 [shape = 'u32[72,128]{1,0:T(1,128)}', space=vmem, size = 0x9000, scoped, tag = 'internal scratch']
  %s0 = inlined_call_operand.hbm [shape: f32[8,32], index: 0, kind: input, shape index: {}]
  %s1 = inlined_call_operand.hbm [shape: f32[32,128], index: 1, kind: input, shape index: {}]
  %s2 = inlined_call_operand.vmem [shape: f32[1,128], index: 2, kind: input, shape index: {}]
  %s3 = inlined_call_operand.hbm [shape: f32[128,128], index: 3, kind: input, shape index: {}]
  %s4 = inlined_call_operand.vmem [shape: f32[1,128], index: 4, kind: input, shape index: {}]
  %s5 = inlined_call_operand.hbm [shape: f32[128,128], index: 5, kind: input, shape index: {}]
  %s6 = inlined_call_operand.vmem [shape: f32[1,4], index: 6, kind: input, shape index: {}]
  %s7 = inlined_call_operand.vmem [shape: f32[8,4], index: 7, kind: output, shape index: {}]
  %s8 = sld [smem:[#allocation0]]
  $region54: #{mlp_forward.1} parent=0
    _
  %s10 = ssub.s32 1, %s8
  %s11 = scalar_select 0, %s10, %s8
  $region1: #{mlp_forward.1} parent=0
    #allocation2 [shape = 'u8[4096]{0}', space=vmem, size = 0x1000, scoped, tag = 'input window, operand 0, single buffered']
    #allocation3 [shape = 's32[1]{0}', space=sflag, size = 0x4, scoped, tag = 'scoped memory for mlp_forward.1']
    #allocation4 [shape = 'u8[16384]{0}', space=vmem, size = 0x4000, scoped, tag = 'input window, operand 1, single buffered']
    #allocation5 [shape = 's32[1]{0}', space=sflag, size = 0x4, scoped, tag = 'scoped memory for mlp_forward.1']
    #allocation6 [shape = 'u8[65536]{0}', space=vmem, size = 0x10000, scoped, tag = 'input window, operand 3, single buffered']
    #allocation7 [shape = 'u8[65536]{0}', space=vmem, size = 0x10000, scoped, tag = 'input window, operand 5, single buffered']
    #allocation8 [shape = 's32[1]{0}', space=sflag, size = 0x4, scoped, tag = 'scoped memory for mlp_forward.1']
    %12 = vsyncpa [#allocation3], 0
    %13 = vsyncpa [#allocation5], 0
    %14 = vsyncpa [#allocation8], 0
    // Predicated region
    $region2: #{mlp_forward.1} parent=1 // pred_check
      _
    $region3: #{mlp_forward.1} parent=1 // pred_check_branch
      %16 = sbr.rel (0) target = $region5
    $region4: #{mlp_forward.1} parent=1 // pred_region
      %18 = vsyncadd [#allocation3], 0
      %s20 = sshll.u32 %s0, 4
      %s21 = int_to_ptr.hbm [resolvable:$true] %s20
      %s22 = sshll.u32 [#allocation2], 4
      %s23 = int_to_ptr.vmem [resolvable:$true] %s22
      %25 = dma.hbm_to_vmem [thread:$0]  %s21, 128, %s23, [#allocation3]
    $region5: #{mlp_forward.1} parent=1 // pred_fallthru
      _
    // Predicated region
    $region6: #{mlp_forward.1} parent=1 // pred_check
      _
    $region7: #{mlp_forward.1} parent=1 // pred_check_branch
      %27 = sbr.rel (0) target = $region9
    $region8: #{mlp_forward.1} parent=1 // pred_region
      %29 = vsyncadd [#allocation5], 0
      %s30 = sshll.u32 %s1, 4
      %s31 = int_to_ptr.hbm [resolvable:$true] %s30
      %s32 = sshll.u32 [#allocation4], 4
      %s33 = int_to_ptr.vmem [resolvable:$true] %s32
      %38 = dma.hbm_to_vmem [thread:$0]  %s31, 512, %s33, [#allocation5], 128, 128, 8
    $region9: #{mlp_forward.1} parent=1 // pred_fallthru
      _
    // Predicated region
    $region10: #{mlp_forward.1} parent=1 // pred_check
      _
    $region11: #{mlp_forward.1} parent=1 // pred_check_branch
      %40 = sbr.rel (0) target = $region13
    $region12: #{mlp_forward.1} parent=1 // pred_region
      _
    $region13: #{mlp_forward.1} parent=1 // pred_fallthru
      _
    // Predicated region
    $region14: #{mlp_forward.1} parent=1 // pred_check
      _
    $region15: #{mlp_forward.1} parent=1 // pred_check_branch
      %42 = sbr.rel (0) target = $region17
    $region16: #{mlp_forward.1} parent=1 // pred_region
      %44 = vsyncadd [#allocation5], 0
      %s45 = sshll.u32 %s3, 4
      %s46 = int_to_ptr.hbm [resolvable:$true] %s45
      %s47 = sshll.u32 [#allocation6], 4
      %s48 = int_to_ptr.vmem [resolvable:$true] %s47
      %53 = dma.hbm_to_vmem [thread:$0]  %s46, 2048, %s48, [#allocation5], 128, 128, 8
    $region17: #{mlp_forward.1} parent=1 // pred_fallthru
      _
    // Predicated region
    $region18: #{mlp_forward.1} parent=1 // pred_check
      _
    $region19: #{mlp_forward.1} parent=1 // pred_check_branch
      %55 = sbr.rel (0) target = $region21
    $region20: #{mlp_forward.1} parent=1 // pred_region
      _
    $region21: #{mlp_forward.1} parent=1 // pred_fallthru
      _
    // Predicated region
    $region22: #{mlp_forward.1} parent=1 // pred_check
      _
    $region23: #{mlp_forward.1} parent=1 // pred_check_branch
      %57 = sbr.rel (0) target = $region25
    $region24: #{mlp_forward.1} parent=1 // pred_region
      %59 = vsyncadd [#allocation8], 0
      %s60 = sshll.u32 %s5, 4
      %s61 = int_to_ptr.hbm [resolvable:$true] %s60
      %s62 = sshll.u32 [#allocation7], 4
      %s63 = int_to_ptr.vmem [resolvable:$true] %s62
      %68 = dma.hbm_to_vmem [thread:$0]  %s61, 2048, %s63, [#allocation8], 128, 128, 8
    $region25: #{mlp_forward.1} parent=1 // pred_fallthru
      _
    // Predicated region
    $region26: #{mlp_forward.1} parent=1 // pred_check
      _
    $region27: #{mlp_forward.1} parent=1 // pred_check_branch
      %70 = sbr.rel (0) target = $region29
    $region28: #{mlp_forward.1} parent=1 // pred_region
      _
    $region29: #{mlp_forward.1} parent=1 // pred_fallthru
      _
    // Predicated region
    $region30: #{mlp_forward.1} parent=1 // pred_check
      _
    $region31: #{mlp_forward.1} parent=1 // pred_check_branch
      %72 = sbr.rel (0) target = $region33
    $region32: #{mlp_forward.1} parent=1 // pred_region
      %74 = dma.done [#allocation3], 128
    $region33: #{mlp_forward.1} parent=1 // pred_fallthru
      _
    // Predicated region
    $region34: #{mlp_forward.1} parent=1 // pred_check
      _
    $region35: #{mlp_forward.1} parent=1 // pred_check_branch
      %76 = sbr.rel (0) target = $region37
    $region36: #{mlp_forward.1} parent=1 // pred_region
      %78 = dma.done [#allocation5], 512
    $region37: #{mlp_forward.1} parent=1 // pred_fallthru
      _
    // Predicated region
    $region38: #{mlp_forward.1} parent=1 // pred_check
      _
    $region39: #{mlp_forward.1} parent=1 // pred_check_branch
      %80 = sbr.rel (0) target = $region41
    $region40: #{mlp_forward.1} parent=1 // pred_region
      %82 = dma.done [#allocation5], 2048
    $region41: #{mlp_forward.1} parent=1 // pred_fallthru
      _
    // Predicated region
    $region42: #{mlp_forward.1} parent=1 // pred_check
      _
    $region43: #{mlp_forward.1} parent=1 // pred_check_branch
      %84 = sbr.rel (0) target = $region45
    $region44: #{mlp_forward.1} parent=1 // pred_region
      %86 = dma.done [#allocation8], 2048
    $region45: #{mlp_forward.1} parent=1 // pred_fallthru
      _
    %v87 = vld [vmem:[#allocation2] sm:$0xff]
    %v88 = vld [vmem:[#allocation4] sm:$0xff]
    %v89 = vld [vmem:[#allocation4 + $0x8] sm:$0xff]
    %v90 = vld [vmem:[#allocation4 + $0x10] sm:$0xff]
    %v91 = vld [vmem:[#allocation4 + $0x18] sm:$0xff]
    %v92 = vld [vmem:[%s2] sm:$0x1]
    %v94 = vperm.slane %v92, 0
    %vm96 = vcmask 261120
    %v98 = vsel %vm96, %v87, 0
    %100 = vmatpush.msra.mxu0 0.0
    %101 = vmatpush.msra.mxu0 0.0
    %102 = vmatpush.msra.mxu0 0.0
    %103 = vmatpush.msra.mxu0 0.0
    %104 = vmatpush.msra.mxu0 0.0
    %105 = vmatpush.msra.mxu0 0.0
    %106 = vmatpush.msra.mxu0 0.0
    %107 = vmatpush.msra.mxu0 0.0
    %108 = vmatpush.msra.mxu0 0.0
    %109 = vmatpush.msra.mxu0 0.0
    %110 = vmatpush.msra.mxu0 0.0
    %111 = vmatpush.msra.mxu0 0.0
    %112 = vmatpush.msra.mxu0 %v91
    %113 = vmatpush.msra.mxu0 %v90
    %114 = vmatpush.msra.mxu0 %v89
    %115 = vmatpush.msra.mxu0 %v88
    %116 = vmatmul.f32.gmra.mxu0 %v98
    %v117 = vpop.f32.mrf.mxu0
    %v118 = vadd.f32 %v94, %v117
    %119 = vdwg.mxu0
    %v120 = vmax.f32 %v118, 0.0
    %v121 = vld [vmem:[#allocation6] sm:$0xff]
    %v122 = vld [vmem:[#allocation6 + $0x8] sm:$0xff]
    %v123 = vld [vmem:[#allocation6 + $0x10] sm:$0xff]
    %v124 = vld [vmem:[#allocation6 + $0x18] sm:$0xff]
    %v125 = vld [vmem:[#allocation6 + $0x20] sm:$0xff]
    %v126 = vld [vmem:[#allocation6 + $0x28] sm:$0xff]
    %v127 = vld [vmem:[#allocation6 + $0x30] sm:$0xff]
    %v128 = vld [vmem:[#allocation6 + $0x38] sm:$0xff]
    %v129 = vld [vmem:[#allocation6 + $0x40] sm:$0xff]
    %v130 = vld [vmem:[#allocation6 + $0x48] sm:$0xff]
    %v131 = vld [vmem:[#allocation6 + $0x50] sm:$0xff]
    %v132 = vld [vmem:[#allocation6 + $0x58] sm:$0xff]
    %v133 = vld [vmem:[#allocation6 + $0x60] sm:$0xff]
    %v134 = vld [vmem:[#allocation6 + $0x68] sm:$0xff]
    %v135 = vld [vmem:[#allocation6 + $0x70] sm:$0xff]
    %v136 = vld [vmem:[#allocation6 + $0x78] sm:$0xff]
    %v137 = vld [vmem:[%s4] sm:$0x1]
    %v139 = vperm.slane %v137, 0
    %141 = vmatpush.msra.mxu0 %v136
    %142 = vmatpush.msra.mxu0 %v135
    %143 = vmatpush.msra.mxu0 %v134
    %144 = vmatpush.msra.mxu0 %v133
    %145 = vmatpush.msra.mxu0 %v132
    %146 = vmatpush.msra.mxu0 %v131
    %147 = vmatpush.msra.mxu0 %v130
    %148 = vmatpush.msra.mxu0 %v129
    %149 = vmatpush.msra.mxu0 %v128
    %150 = vmatpush.msra.mxu0 %v127
    %151 = vmatpush.msra.mxu0 %v126
    %152 = vmatpush.msra.mxu0 %v125
    %153 = vmatpush.msra.mxu0 %v124
    %154 = vmatpush.msra.mxu0 %v123
    %155 = vmatpush.msra.mxu0 %v122
    %156 = vmatpush.msra.mxu0 %v121
    %157 = vmatmul.f32.gmra.mxu0 %v120
    %v158 = vpop.f32.mrf.mxu0
    %v159 = vadd.f32 %v139, %v158
    %160 = vdwg.mxu0
    %v161 = vmax.f32 %v159, 0.0
    %v162 = vld [vmem:[#allocation7] sm:$0xff]
    %v163 = vld [vmem:[#allocation7 + $0x8] sm:$0xff]
    %v164 = vld [vmem:[#allocation7 + $0x10] sm:$0xff]
    %v165 = vld [vmem:[#allocation7 + $0x18] sm:$0xff]
    %v166 = vld [vmem:[#allocation7 + $0x20] sm:$0xff]
    %v167 = vld [vmem:[#allocation7 + $0x28] sm:$0xff]
    %v168 = vld [vmem:[#allocation7 + $0x30] sm:$0xff]
    %v169 = vld [vmem:[#allocation7 + $0x38] sm:$0xff]
    %v170 = vld [vmem:[#allocation7 + $0x40] sm:$0xff]
    %v171 = vld [vmem:[#allocation7 + $0x48] sm:$0xff]
    %v172 = vld [vmem:[#allocation7 + $0x50] sm:$0xff]
    %v173 = vld [vmem:[#allocation7 + $0x58] sm:$0xff]
    %v174 = vld [vmem:[#allocation7 + $0x60] sm:$0xff]
    %v175 = vld [vmem:[#allocation7 + $0x68] sm:$0xff]
    %v176 = vld [vmem:[#allocation7 + $0x70] sm:$0xff]
    %v177 = vld [vmem:[#allocation7 + $0x78] sm:$0xff]
    %178 = vmatpush.msra.mxu0 %v177
    %179 = vmatpush.msra.mxu0 %v176
    %180 = vmatpush.msra.mxu0 %v175
    %181 = vmatpush.msra.mxu0 %v174
    %182 = vmatpush.msra.mxu0 %v173
    %183 = vmatpush.msra.mxu0 %v172
    %184 = vmatpush.msra.mxu0 %v171
    %185 = vmatpush.msra.mxu0 %v170
    %186 = vmatpush.msra.mxu0 %v169
    %187 = vmatpush.msra.mxu0 %v168
    %188 = vmatpush.msra.mxu0 %v167
    %189 = vmatpush.msra.mxu0 %v166
    %190 = vmatpush.msra.mxu0 %v165
    %191 = vmatpush.msra.mxu0 %v164
    %192 = vmatpush.msra.mxu0 %v163
    %193 = vmatpush.msra.mxu0 %v162
    %194 = vmatmul.f32.gmra.mxu0 %v161
    %v195 = vpop.f32.mrf.mxu0
    %v196 = vadd.f32 0.0, %v195
    %197 = vdwg.mxu0
    %v198 = vld [vmem:[%s6] sm:$0x1]
    %v200 = vperm.slane %v198, 0
    %v202 = vadd.f32 %v196, %v200
    %vm203 = vcmask 31744
    %204 = vst.msk [vmem:[%s7] sm:$0xff] %vm203, %v202
    // Predicated region
    $region46: #{mlp_forward.1} parent=1 // pred_check
      _
    $region47: #{mlp_forward.1} parent=1 // pred_check_branch
      %206 = sbr.rel (0) target = $region49
    $region48: #{mlp_forward.1} parent=1 // pred_region
      _
    $region49: #{mlp_forward.1} parent=1 // pred_fallthru
      _
    // Predicated region
    $region50: #{mlp_forward.1} parent=1 // pred_check
      _
    $region51: #{mlp_forward.1} parent=1 // pred_check_branch
      %208 = sbr.rel (0) target = $region53
    $region52: #{mlp_forward.1} parent=1 // pred_region
      _
    $region53: #{mlp_forward.1} parent=1 // pred_fallthru
      _
    %209 = vsyncpa [#allocation3], 1
    %210 = vsyncpa [#allocation5], 1
    %211 = vsyncpa [#allocation8], 1

</llo_original>
